<compile_context>
chip_gen: v5e
topology: v5e:2x2
jax: 0.10.0
libtpu: 0.0.40
codegen_flags: <defaults>
</compile_context>

<pallas_src>
import jax
import jax.numpy as jnp
from jax.experimental import pallas as pl
from jax.experimental.pallas import tpu as pltpu


def _round_up(a: int, b: int) -> int:
    return (a + b - 1) // b * b


def prepare_patch_weight(conv_weight, compute_dtype=jnp.bfloat16):
    """Flatten the Conv1d weight ONCE per model (hoisted out of the hot path).

    conv_weight: (d_model, in_features, patch_size) -- PyTorch Conv1d layout.
    returns: (patch_size * in_features, d_model) in compute_dtype, laid out so
             w_flat[k*in_features + c, d] = conv_weight[d, c, k], which matches
             the row-major flattening of an x patch x[b, p*P + k, c].
    """
    d_model, in_features, patch_size = conv_weight.shape
    w_flat = jnp.transpose(conv_weight, (2, 1, 0)).reshape(
        patch_size * in_features, d_model
    )
    return w_flat.astype(compute_dtype)


def patch_embedding(
    x,
    w_flat,
    patch_size: int,
    d_model: int,
    *,
    tile_m: int = 2048,
    compute_dtype=jnp.bfloat16,
    out_dtype=None,
):
    """
    x:      (batch, steps, in_features) -- same layout PyTorch forward() sees.
    w_flat: (patch_size * in_features, d_model) from prepare_patch_weight().
    returns (batch, steps // patch_size, d_model).

    Trailing steps with steps % patch_size != 0 are dropped, exactly like a
    VALID strided Conv1d.
    """
    B, S, C = x.shape
    P = patch_size
    NP = S // P
    K, N = w_flat.shape
    assert K == P * C, "w_flat contraction dim must equal patch_size * in_features"
    assert N == d_model, "w_flat output dim must equal d_model"
    out_dtype = x.dtype if out_dtype is None else out_dtype

    # Non-overlapping stride=P conv == matmul over flattened patches. When
    # S % P == 0 the slice is a no-op and the reshape is a contiguous view --
    # no extra HBM pass in the wrapper (x keeps its native dtype).
    x_pat = x[:, : NP * P, :].reshape(B * NP, K)
    M = B * NP

    # Big M tiles keep the auto double-buffered DMA pipeline near the HBM
    # roofline (per-grid-step overhead ~0.35us); the second-to-last block dim
    # must be a multiple of 8 (or the full extent), last dims use full extents.
    TILE_M = max(8, min(tile_m, _round_up(M, 8)))
    grid_m = pl.cdiv(M, TILE_M)

    x_bytes = jnp.dtype(x_pat.dtype).itemsize
    w_bytes = jnp.dtype(w_flat.dtype).itemsize
    out_bytes = jnp.dtype(out_dtype).itemsize

    # Double-buffered x tile + double-buffered out tile + resident weight.
    vmem_need = (
        2 * TILE_M * K * x_bytes
        + 2 * TILE_M * N * out_bytes
        + K * N * w_bytes
    )
    vmem_limit = int(min(max(2 * vmem_need + (1 << 20), 4 << 20), 64 << 20))

    cost = pl.CostEstimate(
        flops=2 * M * K * N,
        transcendentals=0,
        bytes_accessed=M * K * x_bytes + K * N * w_bytes + M * N * out_bytes,
    )

    def kernel(x_ref, w_ref, o_ref):
        # Cast the streamed tile to bf16 on the VPU (free vs. an extra HBM
        # pass in the wrapper); f32 accumulation on the MXU.
        x_t = x_ref[...].astype(compute_dtype)
        o_ref[...] = jnp.dot(
            x_t, w_ref[...], preferred_element_type=jnp.float32
        ).astype(o_ref.dtype)

    out = pl.pallas_call(
        kernel,
        out_shape=jax.ShapeDtypeStruct((M, N), out_dtype),
        grid=(grid_m,),
        in_specs=[
            # Streamed patch tiles: new block every grid step.
            pl.BlockSpec((TILE_M, K), lambda i: (i, 0)),
            # Weight: constant index map -> stays VMEM-resident, DMA'd once.
            pl.BlockSpec((K, N), lambda i: (0, 0)),
        ],
        out_specs=pl.BlockSpec((TILE_M, N), lambda i: (i, 0)),
        compiler_params=pltpu.CompilerParams(
            dimension_semantics=("parallel",),  # independent M tiles (TC sharding)
            vmem_limit_bytes=vmem_limit,
        ),
        cost_estimate=cost,
    )(x_pat, w_flat)

    return out.reshape(B, NP, d_model)


# TODO(synk): unpatch()/auto_encode() (the optional nn.Linear unpatcher) are not
# part of forward(); they are not implemented here.


if __name__ == "__main__":
    key = jax.random.PRNGKey(0)

    # Module config (small, consistent with the forward pass).
    in_features, patch_size, d_model = 4, 4, 32
    batch, steps = 2, 16  # steps divisible by patch_size

    kx, kw = jax.random.split(key)
    x = jax.random.normal(kx, (batch, steps, in_features), dtype=jnp.float32)

    # Deterministic synthetic Conv1d weight (kaiming-uniform-style bound),
    # shape (d_model, in_features, patch_size) as in nn.Conv1d. No bias.
    fan_in = in_features * patch_size
    bound = 1.0 / (fan_in ** 0.5)
    w = jax.random.uniform(
        kw, (d_model, in_features, patch_size),
        dtype=jnp.float32, minval=-bound, maxval=bound,
    )

    # Weight flattening hoisted out of the per-call path.
    w_flat = prepare_patch_weight(w, compute_dtype=jnp.bfloat16)

    y = patch_embedding(x, w_flat, patch_size, d_model)
    y = jax.block_until_ready(y)

    # Reference: XLA strided conv in NCW layout on bf16-rounded operands with
    # f32 accumulation (matches the kernel's bf16-compute / f32-accum numerics).
    xb = x.astype(jnp.bfloat16).astype(jnp.float32)
    wb = w.astype(jnp.bfloat16).astype(jnp.float32)
    y_ref = jax.lax.conv_general_dilated(
        jnp.transpose(xb, (0, 2, 1)), wb,
        window_strides=(patch_size,), padding="VALID",
        dimension_numbers=("NCH", "OIH", "NCH"),
        precision=jax.lax.Precision.HIGHEST,
    )
    y_ref = jnp.transpose(y_ref, (0, 2, 1))

    assert y.shape == (batch, steps // patch_size, d_model)
    assert jnp.allclose(y, y_ref, atol=1e-3, rtol=1e-3), \
        "Pallas kernel mismatch vs reference"
    print("KERNEL_OK")
</pallas_src>

<mosaic_0001>
module attributes {stable_mosaic.version = 11 : i64} {
  func.func @kernel(%arg0: i32, %arg1: memref<8x16xf32, #tpu.memory_space<vmem>>, %arg2: memref<16x32xbf16, #tpu.memory_space<vmem>>, %arg3: memref<8x32xf32, #tpu.memory_space<vmem>>) attributes {dimension_semantics = [#tpu.dimension_semantics<parallel>], iteration_bounds = array<i64: 1>, scalar_prefetch = 0 : i64, scratch_operands = 0 : i64, tpu.core_type = #tpu.core_type<tc>, window_params = [{transform_indices = @transform_0, window_bounds = array<i64: 8, 16>}, {pipeline_mode = #tpu.pipeline_mode<synchronous>, transform_indices = @transform_1, window_bounds = array<i64: 16, 32>}, {transform_indices = @transform_2, window_bounds = array<i64: 8, 32>}]} {
    %c0 = arith.constant 0 : index
    %c0_0 = arith.constant 0 : index
    %0 = vector.load %arg1[%c0, %c0_0] : memref<8x16xf32, #tpu.memory_space<vmem>>, vector<8x16xf32>
    %1 = arith.truncf %0 : vector<8x16xf32> to vector<8x16xbf16>
    %c0_1 = arith.constant 0 : index
    %c0_2 = arith.constant 0 : index
    %2 = vector.load %arg2[%c0_1, %c0_2] : memref<16x32xbf16, #tpu.memory_space<vmem>>, vector<16x32xbf16>
    %cst = arith.constant dense<0.000000e+00> : vector<8x32xf32>
    %3 = tpu.matmul %1, %2, %cst {dimension_numbers = #tpu.dot_dimension_numbers<[1], [0], [0], [1], [0, 0, 1, 1], [], []>} : vector<8x16xbf16>, vector<16x32xbf16>, vector<8x32xf32> -> vector<8x32xf32>
    %c0_3 = arith.constant 0 : index
    %c0_4 = arith.constant 0 : index
    %4 = vector.load %arg3[%c0_3, %c0_4] : memref<8x32xf32, #tpu.memory_space<vmem>>, vector<8x32xf32>
    tpu.vector_store %arg3[%c0_3, %c0_4], %3 {strides = array<i32>} : memref<8x32xf32, #tpu.memory_space<vmem>>, vector<8x32xf32>,
    return
  }
  func.func @transform_0(%arg0: i32) -> (i32, i32) {
    %c0_i32 = arith.constant 0 : i32
    %c0_i32_0 = arith.constant 0 : i32
    return %arg0, %c0_i32 : i32, i32
  }
  func.func @transform_1(%arg0: i32) -> (i32, i32) {
    %c0_i32 = arith.constant 0 : i32
    %c0_i32_0 = arith.constant 0 : i32
    %c0_i32_1 = arith.constant 0 : i32
    return %c0_i32, %c0_i32_0 : i32, i32
  }
  func.func @transform_2(%arg0: i32) -> (i32, i32) {
    %c0_i32 = arith.constant 0 : i32
    %c0_i32_0 = arith.constant 0 : i32
    return %arg0, %c0_i32 : i32, i32
  }
}

</mosaic_0001>

<llo_original>
// kernel: tpu_custom_call.1
$region0: #{tpu_custom_call.1}
  #allocation0 [shape = 'u32[]', space=smem, size = 0x4, offset = 0x4, fixed_abs, tag = 'smem constant byte address 0x4 - core index']
  #allocation1 [shape = 'u32[72,128]{1,0:T(1,128)}', space=vmem, size = 0x9000, scoped, tag = 'internal scratch']
  %s0 = inlined_call_operand.hbm [shape: f32[8,16], index: 0, kind: input, shape index: {}]
  %s1 = inlined_call_operand.hbm [shape: bf16[16,32], index: 1, kind: input, shape index: {}]
  %s2 = inlined_call_operand.hbm [shape: f32[8,32], index: 2, kind: output, shape index: {}]
  %s3 = sld [smem:[#allocation0]]
  $region26: #{tpu_custom_call.1} parent=0
    _
  %s5 = ssub.s32 1, %s3
  %s6 = scalar_select 0, %s5, %s3
  $region1: #{tpu_custom_call.1} parent=0
    #allocation2 [shape = 'u8[4096]{0}', space=vmem, size = 0x1000, scoped, tag = 'input window, operand 0, single buffered']
    #allocation3 [shape = 's32[1]{0}', space=sflag, size = 0x4, scoped, tag = 'scoped memory for tpu_custom_call.1']
    #allocation4 [shape = 's32[1]{0}', space=sflag, size = 0x4, scoped, tag = 'scoped memory for tpu_custom_call.1']
    #allocation5 [shape = 'u8[4096]{0}', space=vmem, size = 0x1000, scoped, tag = 'input window, operand 1, single buffered']
    #allocation6 [shape = 's32[1]{0}', space=sflag, size = 0x4, scoped, tag = 'scoped memory for tpu_custom_call.1']
    #allocation7 [shape = 'u8[4096]{0}', space=vmem, size = 0x1000, scoped, tag = 'output window, operand 0, single buffered']
    %7 = vsyncpa [#allocation3], 0
    %8 = vsyncpa [#allocation6], 0
    %9 = vsyncpa [#allocation4], 0
    // Predicated region
    $region2: #{tpu_custom_call.1} parent=1 // pred_check
      _
    $region3: #{tpu_custom_call.1} parent=1 // pred_check_branch
      %11 = sbr.rel (0) target = $region5
    $region4: #{tpu_custom_call.1} parent=1 // pred_region
      %13 = vsyncadd [#allocation3], 0
      %s15 = sshll.u32 %s0, 4
      %s16 = int_to_ptr.hbm [resolvable:$true] %s15
      %s17 = sshll.u32 [#allocation2], 4
      %s18 = int_to_ptr.vmem [resolvable:$true] %s17
      %20 = dma.hbm_to_vmem [thread:$0]  %s16, 128, %s18, [#allocation3]
    $region5: #{tpu_custom_call.1} parent=1 // pred_fallthru
      _
    // Predicated region
    $region6: #{tpu_custom_call.1} parent=1 // pred_check
      _
    $region7: #{tpu_custom_call.1} parent=1 // pred_check_branch
      %22 = sbr.rel (0) target = $region9
    $region8: #{tpu_custom_call.1} parent=1 // pred_region
      %24 = vsyncadd [#allocation6], 0
      %s25 = sshll.u32 %s1, 4
      %s26 = int_to_ptr.hbm [resolvable:$true] %s25
      %s27 = sshll.u32 [#allocation5], 4
      %s28 = int_to_ptr.vmem [resolvable:$true] %s27
      %33 = dma.hbm_to_vmem [thread:$0]  %s26, 128, %s28, [#allocation6], 64, 64, 4
    $region9: #{tpu_custom_call.1} parent=1 // pred_fallthru
      _
    // Predicated region
    $region10: #{tpu_custom_call.1} parent=1 // pred_check
      _
    $region11: #{tpu_custom_call.1} parent=1 // pred_check_branch
      %35 = sbr.rel (0) target = $region13
    $region12: #{tpu_custom_call.1} parent=1 // pred_region
      %37 = dma.done [#allocation3], 128
    $region13: #{tpu_custom_call.1} parent=1 // pred_fallthru
      _
    // Predicated region
    $region14: #{tpu_custom_call.1} parent=1 // pred_check
      _
    $region15: #{tpu_custom_call.1} parent=1 // pred_check_branch
      %39 = sbr.rel (0) target = $region17
    $region16: #{tpu_custom_call.1} parent=1 // pred_region
      %41 = dma.done [#allocation6], 128
    $region17: #{tpu_custom_call.1} parent=1 // pred_fallthru
      _
    %v43 = vld [vmem:[#allocation2] sm:$0xff]
    %v44 = vpack.c.bf16 %v43, %v43
    %v45 = vld [vmem:[#allocation5] sm:$0xf]
    %v46 = vld [vmem:[#allocation5 + $0x4] sm:$0xf]
    %v49 = vunpack.c.l.b16 %v45
    %v50 = vunpack.c.l.b16 %v46
    %v51 = vpack.c.b16 %v50, %v49
    %vm53 = vcmask 130048
    %v55 = vsel %vm53, %v44, 0
    %57 = vmatpush.bf16.msra.mxu0 0
    %58 = vmatpush.bf16.msra.mxu0 0
    %59 = vmatpush.bf16.msra.mxu0 0
    %60 = vmatpush.bf16.msra.mxu0 0
    %61 = vmatpush.bf16.msra.mxu0 0
    %62 = vmatpush.bf16.msra.mxu0 0
    %63 = vmatpush.bf16.msra.mxu0 0
    %64 = vmatpush.bf16.msra.mxu0 %v51
    %65 = vmatmul.bf16.gmra.mxu0 %v55
    %v66 = vpop.f32.mrf.mxu0
    %v67 = vadd.f32 0.0, %v66
    %v68 = vpop.f32.mrf.mxu0
    %69 = vdwg.mxu0
    %vm70 = vcmask 261120
    %71 = vst.msk [vmem:[#allocation7] sm:$0xff] %vm70, %v67
    // Predicated region
    $region18: #{tpu_custom_call.1} parent=1 // pred_check
      _
    $region19: #{tpu_custom_call.1} parent=1 // pred_check_branch
      %73 = sbr.rel (0) target = $region21
    $region20: #{tpu_custom_call.1} parent=1 // pred_region
      %75 = vsyncadd [#allocation4], 0
      %s77 = sshll.u32 [#allocation7], 4
      %s78 = int_to_ptr.vmem [resolvable:$true] %s77
      %s79 = sshll.u32 %s2, 4
      %s80 = int_to_ptr.hbm [resolvable:$true] %s79
      %82 = dma.vmem_to_hbm [thread:$0]  %s78, 128, %s80, [#allocation4]
    $region21: #{tpu_custom_call.1} parent=1 // pred_fallthru
      _
    // Predicated region
    $region22: #{tpu_custom_call.1} parent=1 // pred_check
      _
    $region23: #{tpu_custom_call.1} parent=1 // pred_check_branch
      %84 = sbr.rel (0) target = $region25
    $region24: #{tpu_custom_call.1} parent=1 // pred_region
      %86 = dma.done [#allocation4], 128
    $region25: #{tpu_custom_call.1} parent=1 // pred_fallthru
      _
    %87 = vsyncpa [#allocation3], 1
    %88 = vsyncpa [#allocation6], 1
    %89 = vsyncpa [#allocation4], 1

</llo_original>
